<compile_context>
chip_gen: v7x
topology: tpu7x:2x2x1
jax: 0.10.0
libtpu: 0.0.40
codegen_flags: <defaults>
</compile_context>

<pallas_src>
import functools

import jax
import jax.numpy as jnp
from jax.experimental import pallas as pl
from jax.experimental.pallas import tpu as pltpu

EPS = 1e-5  # PyTorch BatchNorm1d default eps

# Conservative cross-generation VMEM budget: v7x has 64 MiB/TC (v5e/v6e have
# 128 MiB); pick tiles under ~40 MiB and cap the scoped limit at 48 MiB.
_VMEM_TILE_BUDGET = 40 * 1024 * 1024
_VMEM_LIMIT_BYTES = 48 * 1024 * 1024


# ----------------------------- Pallas kernels --------------------------------
def _linear_bn_kernel(x_ref, w_ref, g_ref, b_ref, o_ref, *, relu):
    """Fused Linear(bias=False) -> training-mode BatchNorm1d -> (ReLU).

    x_ref: (rows, K) bf16, fully resident (constant block index across grid).
    w_ref: (K, tn) bf16 weight tile.  g_ref/b_ref: (1, tn) f32 BN affine.
    Stats are per-feature, so splitting the feature axis across grid tiles
    (and across v7x TensorCores) is legal.
    """
    h = jnp.dot(x_ref[...], w_ref[...],
                preferred_element_type=jnp.float32)          # (rows, tn) f32
    rows = h.shape[0]
    inv_n = jnp.float32(1.0 / rows)
    mu = jnp.sum(h, axis=0, keepdims=True) * inv_n            # (1, tn)
    d = h - mu
    var = jnp.sum(d * d, axis=0, keepdims=True) * inv_n       # two-pass stats
    y = d * jax.lax.rsqrt(var + EPS)
    y = y * g_ref[...] + b_ref[...]
    if relu:
        y = jnp.maximum(y, 0.0)
    o_ref[...] = y.astype(o_ref.dtype)


def _choose_tile_n(N, rows, K, out_itemsize):
    """Largest lane-dense N tile fitting the VMEM budget; prefer >=2 tiles
    (so v7x's second TensorCore has work) when N allows."""
    def fits(tn):
        x_bytes = 2 * rows * K * 2            # resident bf16 activation (2 bufs)
        w_bytes = 2 * K * tn * 2              # double-buffered bf16 weight tile
        o_bytes = 2 * rows * tn * out_itemsize
        h_bytes = 2 * rows * tn * 4           # f32 matmul result / BN temps
        return x_bytes + w_bytes + o_bytes + h_bytes < _VMEM_TILE_BUDGET

    tn = N if N <= 128 else N // 2
    while tn > 128 and (tn % 128 != 0 or N % tn != 0 or not fits(tn)):
        tn //= 2
    if tn % 128 != 0 or N % tn != 0:
        tn = 128
    return tn


def _fused_linear_bn(x_bf16, w_bf16, gamma, beta, *, relu, out_dtype):
    """pallas_call wrapper for one fused projector layer.

    x_bf16: (rows, K) bf16 activation.  w_bf16: (K, N) bf16.  gamma/beta:
    (1, N) f32 BN affine parameters.
    """
    rows, K = x_bf16.shape
    Kw, N = w_bf16.shape
    assert K == Kw
    assert N % 128 == 0 and K % 128 == 0, "feature dims must be 128-multiples"
    # rows = 2B; multiples of 8 keep sublane accesses unmasked (legal either way)

    out_itemsize = jnp.dtype(out_dtype).itemsize
    tn = _choose_tile_n(N, rows, K, out_itemsize)
    grid = (N // tn,)  # single parallel axis over output-feature tiles

    x_spec = pl.BlockSpec((rows, K), lambda j: (0, 0))      # resident, DMA'd once
    w_spec = pl.BlockSpec((K, tn), lambda j: (0, j))
    vec_spec = pl.BlockSpec((1, tn), lambda j: (0, j))
    out_spec = pl.BlockSpec((rows, tn), lambda j: (0, j))

    cost = pl.CostEstimate(
        flops=2 * rows * K * N,
        transcendentals=N,                                    # rsqrt per feature
        bytes_accessed=rows * K * 2 + K * N * 2 + rows * N * out_itemsize
                       + 2 * N * 4)

    return pl.pallas_call(
        functools.partial(_linear_bn_kernel, relu=relu),
        out_shape=jax.ShapeDtypeStruct((rows, N), out_dtype),
        grid_spec=pltpu.PrefetchScalarGridSpec(
            num_scalar_prefetch=0,
            grid=grid,
            in_specs=[x_spec, w_spec, vec_spec, vec_spec],
            out_specs=out_spec),
        compiler_params=pltpu.CompilerParams(
            dimension_semantics=("parallel",),
            vmem_limit_bytes=_VMEM_LIMIT_BYTES),
        cost_estimate=cost,
    )(x_bf16, w_bf16, gamma, beta)


def simsiam_projector(flat, params):
    """SimSiamMLP(dim, projection_size, hidden_size) forward (training mode).

    flat: (2B, dim) row-concatenated representations.  Weights in params are
    stored in bf16 (no per-forward cast); activations flow in bf16 between
    layers with f32 accumulation inside each kernel.
    """
    x = flat.astype(jnp.bfloat16)
    # Linear(dim, hidden, bias=False) -> BN -> ReLU
    h = _fused_linear_bn(x, params["w1"], params["g1"], params["b1"],
                         relu=True, out_dtype=jnp.bfloat16)
    # Linear(hidden, hidden, bias=False) -> BN -> ReLU
    h = _fused_linear_bn(h, params["w2"], params["g2"], params["b2"],
                         relu=True, out_dtype=jnp.bfloat16)
    # Linear(hidden, projection_size, bias=False) -> BN(affine=False)
    proj = params["w3"].shape[1]
    g3 = jnp.ones((1, proj), jnp.float32)     # affine=False == gamma 1, beta 0
    b3 = jnp.zeros((1, proj), jnp.float32)
    return _fused_linear_bn(h, params["w3"], g3, b3,
                            relu=False, out_dtype=jnp.float32)


# --------------------------- NetWrapper forward ------------------------------
def stub_net(x, x_surf, w_enc):
    # Deterministic stand-in for the hooked hidden layer of `self.net`:
    # returns (representation, representation_surf), each (B, D).
    feat = jnp.mean(x, axis=(2, 3))            # (B, C) global avg pool (NCHW)
    feat_surf = jnp.mean(x_surf, axis=(2, 3))  # (B, C)
    return feat @ w_enc, feat_surf @ w_enc


def net_wrapper_forward(x, x_surf, params, return_projection=True):
    rep, rep_surf = stub_net(x, x_surf, params["w_enc"])
    if not return_projection:
        return rep
    # rearrange '... d -> (...) d' + torch.cat along rows (tiny; done in JAX)
    flat = rep.reshape(-1, rep.shape[-1])
    flat_surf = rep_surf.reshape(-1, rep_surf.shape[-1])
    flat_all = jnp.concatenate([flat, flat_surf], axis=0)     # (2B, D)
    projection = simsiam_projector(flat_all, params)          # (2B, proj)
    return projection, rep


# ------------------------------ references -----------------------------------
def projector_reference_bf16(flat_all, params):
    """Pure-JAX reference mirroring the kernel math (bf16 operands, f32 acc,
    two-pass variance)."""
    def layer(x_bf16, w_bf16, g, b, relu, out_dtype):
        h = jnp.dot(x_bf16, w_bf16, preferred_element_type=jnp.float32)
        mu = jnp.mean(h, axis=0, keepdims=True)
        var = jnp.mean((h - mu) ** 2, axis=0, keepdims=True)
        y = (h - mu) * jax.lax.rsqrt(var + EPS) * g + b
        if relu:
            y = jnp.maximum(y, 0.0)
        return y.astype(out_dtype)

    x = flat_all.astype(jnp.bfloat16)
    h = layer(x, params["w1"], params["g1"], params["b1"], True, jnp.bfloat16)
    h = layer(h, params["w2"], params["g2"], params["b2"], True, jnp.bfloat16)
    one = jnp.ones((1, params["w3"].shape[1]), jnp.float32)
    return layer(h, params["w3"], one, jnp.zeros_like(one), False, jnp.float32)


def projector_reference_f32(flat_all, params):
    """Full-f32 reference of the original module semantics (same effective
    bf16-stored weights, upcast)."""
    def bn(h, g, b):
        mu = jnp.mean(h, axis=0, keepdims=True)
        var = jnp.mean((h - mu) ** 2, axis=0, keepdims=True)
        return (h - mu) * jax.lax.rsqrt(var + EPS) * g + b

    w1 = params["w1"].astype(jnp.float32)
    w2 = params["w2"].astype(jnp.float32)
    w3 = params["w3"].astype(jnp.float32)
    h = jnp.maximum(bn(flat_all @ w1, params["g1"], params["b1"]), 0.0)
    h = jnp.maximum(bn(h @ w2, params["g2"], params["b2"]), 0.0)
    h = h @ w3
    mu = jnp.mean(h, axis=0, keepdims=True)
    var = jnp.mean((h - mu) ** 2, axis=0, keepdims=True)
    return (h - mu) * jax.lax.rsqrt(var + EPS)


# --------------------------------- main ---------------------------------------
if __name__ == "__main__":
    B, C, HS, WS = 8, 4, 16, 16          # backbone input (NCHW)
    D = 128                              # representation dim (lane-dense)
    PROJECTION_SIZE = 128                # lane-dense (stands in for 256)
    PROJECTION_HIDDEN = 256              # lane-dense (stands in for 4096)

    key = jax.random.PRNGKey(0)
    k_x, k_xs, k_enc, k_w1, k_w2, k_w3 = jax.random.split(key, 6)

    x = jax.random.normal(k_x, (B, C, HS, WS), dtype=jnp.float32)
    x_surf = jax.random.normal(k_xs, (B, C, HS, WS), dtype=jnp.float32)

    params = {
        # stub encoder (glue; stands in for the external backbone)
        "w_enc": jax.random.normal(k_enc, (C, D), dtype=jnp.float32) * 0.5,
        # SimSiamMLP parameters.  Linear weights stored as (in, out) in bf16
        # (matmul operand dtype; avoids a per-forward f32->bf16 cast).  BN
        # affine params at PyTorch init: gamma=1, beta=0 (f32).
        "w1": (jax.random.normal(k_w1, (D, PROJECTION_HIDDEN),
                                 dtype=jnp.float32) * 0.1).astype(jnp.bfloat16),
        "g1": jnp.ones((1, PROJECTION_HIDDEN), dtype=jnp.float32),
        "b1": jnp.zeros((1, PROJECTION_HIDDEN), dtype=jnp.float32),
        "w2": (jax.random.normal(k_w2, (PROJECTION_HIDDEN, PROJECTION_HIDDEN),
                                 dtype=jnp.float32) * 0.1).astype(jnp.bfloat16),
        "g2": jnp.ones((1, PROJECTION_HIDDEN), dtype=jnp.float32),
        "b2": jnp.zeros((1, PROJECTION_HIDDEN), dtype=jnp.float32),
        "w3": (jax.random.normal(k_w3, (PROJECTION_HIDDEN, PROJECTION_SIZE),
                                 dtype=jnp.float32) * 0.1).astype(jnp.bfloat16),
    }

    projection, representation = net_wrapper_forward(x, x_surf, params)
    projection = jax.block_until_ready(projection)
    representation = jax.block_until_ready(representation)

    assert projection.shape == (2 * B, PROJECTION_SIZE)
    assert representation.shape == (B, D)

    # correctness checks
    rep, rep_surf = stub_net(x, x_surf, params["w_enc"])
    flat_all = jnp.concatenate([rep.reshape(-1, D), rep_surf.reshape(-1, D)],
                               axis=0)

    ref_bf16 = projector_reference_bf16(flat_all, params)
    assert jnp.allclose(projection, ref_bf16, atol=2e-2, rtol=2e-2), \
        "mismatch vs bf16-matched reference"

    ref_f32 = projector_reference_f32(flat_all, params)
    assert jnp.allclose(projection, ref_f32, atol=5e-2, rtol=5e-2), \
        "mismatch vs f32 module-semantics reference"

    print("KERNEL_OK")
</pallas_src>

<mosaic_0001>
module attributes {stable_mosaic.version = 11 : i64} {
  func.func @_linear_bn_kernel(%arg0: i32, %arg1: memref<16x128xbf16, #tpu.memory_space<vmem>>, %arg2: memref<128x128xbf16, #tpu.memory_space<vmem>>, %arg3: memref<1x128xf32, #tpu.memory_space<vmem>>, %arg4: memref<1x128xf32, #tpu.memory_space<vmem>>, %arg5: memref<16x128xbf16, #tpu.memory_space<vmem>>) attributes {dimension_semantics = [#tpu.dimension_semantics<parallel>], iteration_bounds = array<i64: 2>, scalar_prefetch = 0 : i64, scratch_operands = 0 : i64, tpu.core_type = #tpu.core_type<tc>, window_params = [{pipeline_mode = #tpu.pipeline_mode<synchronous>, transform_indices = @transform_0, window_bounds = array<i64: 16, 128>}, {transform_indices = @transform_1, window_bounds = array<i64: 128, 128>}, {transform_indices = @transform_2, window_bounds = array<i64: 1, 128>}, {transform_indices = @transform_3, window_bounds = array<i64: 1, 128>}, {transform_indices = @transform_4, window_bounds = array<i64: 16, 128>}]} {
    %c0 = arith.constant 0 : index
    %c0_0 = arith.constant 0 : index
    %0 = vector.load %arg1[%c0, %c0_0] : memref<16x128xbf16, #tpu.memory_space<vmem>>, vector<16x128xbf16>
    %c0_1 = arith.constant 0 : index
    %c0_2 = arith.constant 0 : index
    %1 = vector.load %arg2[%c0_1, %c0_2] : memref<128x128xbf16, #tpu.memory_space<vmem>>, vector<128x128xbf16>
    %cst = arith.constant dense<0.000000e+00> : vector<16x128xf32>
    %2 = tpu.matmul %0, %1, %cst {dimension_numbers = #tpu.dot_dimension_numbers<[1], [0], [0], [1], [0, 0, 1, 1], [], []>} : vector<16x128xbf16>, vector<128x128xbf16>, vector<16x128xf32> -> vector<16x128xf32>
    %cst_3 = arith.constant dense<0.000000e+00> : vector<128xf32>
    %3 = vector.multi_reduction <add>, %2, %cst_3 [0] : vector<16x128xf32> to vector<128xf32>
    %4 = vector.shape_cast %3 : vector<128xf32> to vector<1x128xf32>
    %cst_4 = arith.constant 6.250000e-02 : f32
    %5 = vector.broadcast %cst_4 : f32 to vector<1x128xf32>
    %6 = arith.mulf %4, %5 : vector<1x128xf32>
    %7 = vector.broadcast %6 : vector<1x128xf32> to vector<16x128xf32>
    %8 = arith.subf %2, %7 : vector<16x128xf32>
    %9 = arith.mulf %8, %8 : vector<16x128xf32>
    %cst_5 = arith.constant dense<0.000000e+00> : vector<128xf32>
    %10 = vector.multi_reduction <add>, %9, %cst_5 [0] : vector<16x128xf32> to vector<128xf32>
    %11 = vector.shape_cast %10 : vector<128xf32> to vector<1x128xf32>
    %cst_6 = arith.constant 6.250000e-02 : f32
    %12 = vector.broadcast %cst_6 : f32 to vector<1x128xf32>
    %13 = arith.mulf %11, %12 : vector<1x128xf32>
    %cst_7 = arith.constant 9.99999974E-6 : f32
    %14 = vector.broadcast %cst_7 : f32 to vector<1x128xf32>
    %15 = arith.addf %13, %14 : vector<1x128xf32>
    %16 = math.rsqrt %15 : vector<1x128xf32>
    %17 = vector.broadcast %16 : vector<1x128xf32> to vector<16x128xf32>
    %18 = arith.mulf %8, %17 : vector<16x128xf32>
    %c0_8 = arith.constant 0 : index
    %c0_9 = arith.constant 0 : index
    %19 = vector.load %arg3[%c0_8, %c0_9] : memref<1x128xf32, #tpu.memory_space<vmem>>, vector<1x128xf32>
    %20 = vector.broadcast %19 : vector<1x128xf32> to vector<16x128xf32>
    %21 = arith.mulf %18, %20 : vector<16x128xf32>
    %c0_10 = arith.constant 0 : index
    %c0_11 = arith.constant 0 : index
    %22 = vector.load %arg4[%c0_10, %c0_11] : memref<1x128xf32, #tpu.memory_space<vmem>>, vector<1x128xf32>
    %23 = vector.broadcast %22 : vector<1x128xf32> to vector<16x128xf32>
    %24 = arith.addf %21, %23 : vector<16x128xf32>
    %cst_12 = arith.constant 0.000000e+00 : f32
    %25 = vector.broadcast %cst_12 : f32 to vector<16x128xf32>
    %26 = arith.maximumf %24, %25 : vector<16x128xf32>
    %27 = arith.truncf %26 : vector<16x128xf32> to vector<16x128xbf16>
    %c0_13 = arith.constant 0 : index
    %c0_14 = arith.constant 0 : index
    %28 = vector.load %arg5[%c0_13, %c0_14] : memref<16x128xbf16, #tpu.memory_space<vmem>>, vector<16x128xbf16>
    tpu.vector_store %arg5[%c0_13, %c0_14], %27 {strides = array<i32>} : memref<16x128xbf16, #tpu.memory_space<vmem>>, vector<16x128xbf16>,
    return
  }
  func.func @transform_0(%arg0: i32) -> (i32, i32) {
    %c0_i32 = arith.constant 0 : i32
    %c0_i32_0 = arith.constant 0 : i32
    %c0_i32_1 = arith.constant 0 : i32
    return %c0_i32, %c0_i32_0 : i32, i32
  }
  func.func @transform_1(%arg0: i32) -> (i32, i32) {
    %c0_i32 = arith.constant 0 : i32
    %c0_i32_0 = arith.constant 0 : i32
    return %c0_i32, %arg0 : i32, i32
  }
  func.func @transform_2(%arg0: i32) -> (i32, i32) {
    %c0_i32 = arith.constant 0 : i32
    %c0_i32_0 = arith.constant 0 : i32
    return %c0_i32, %arg0 : i32, i32
  }
  func.func @transform_3(%arg0: i32) -> (i32, i32) {
    %c0_i32 = arith.constant 0 : i32
    %c0_i32_0 = arith.constant 0 : i32
    return %c0_i32, %arg0 : i32, i32
  }
  func.func @transform_4(%arg0: i32) -> (i32, i32) {
    %c0_i32 = arith.constant 0 : i32
    %c0_i32_0 = arith.constant 0 : i32
    return %c0_i32, %arg0 : i32, i32
  }
}

</mosaic_0001>

<llo_original>
// kernel: tpu_custom_call.1
$region0: #{tpu_custom_call.1}
  #allocation0 [shape = 'u32[]', space=smem, size = 0x4, offset = 0x4, fixed_abs, tag = 'smem constant byte address 0x4 - core index']
  #allocation1 [shape = 'u32[144,128]{1,0:T(1,128)}', space=vmem, size = 0x12000, scoped, tag = 'internal scratch']
  %s0 = inlined_call_operand.hbm [shape: bf16[16,128], index: 0, kind: input, shape index: {}]
  %s1 = inlined_call_operand.hbm [shape: bf16[128,256], index: 1, kind: input, shape index: {}]
  %s2 = inlined_call_operand.vmem [shape: f32[1,256], index: 2, kind: input, shape index: {}]
  %s3 = inlined_call_operand.vmem [shape: f32[1,256], index: 3, kind: input, shape index: {}]
  %s4 = inlined_call_operand.hbm [shape: bf16[16,256], index: 4, kind: output, shape index: {}]
  %s5 = sld [smem:[#allocation0]]
  $region57: #{tpu_custom_call.1} parent=0
    _
  %s7 = ssub.s32 1, %s5
  %s8 = scalar_select 0, %s7, %s5
  $region1: #{tpu_custom_call.1} parent=0
    #allocation2 [shape = 'u8[4096]{0}', space=vmem, size = 0x1000, scoped, tag = 'input window, operand 0, single buffered']
    #allocation3 [shape = 's32[2]{0}', space=sflag, size = 0x8, scoped, tag = 'scoped memory for tpu_custom_call.1']
    #allocation4 [shape = 's32[2]{0}', space=sflag, size = 0x8, scoped, tag = 'scoped memory for tpu_custom_call.1']
    #allocation5 [shape = 'u8[65536]{0}', space=vmem, size = 0x10000, scoped, tag = 'input window, operand 1']
    #allocation6 [shape = 's32[2]{0}', space=sflag, size = 0x8, scoped, tag = 'scoped memory for tpu_custom_call.1']
    #allocation7 [shape = 'u8[8192]{0}', space=vmem, size = 0x2000, scoped, tag = 'output window, operand 0']
    %9 = vsyncpa [#allocation3], 0
    %10 = vsyncpa [#allocation6], 0
    %s11 = scalar_lea.sflag [#allocation6], 1
    %12 = vsyncpa %s11, 0
    %13 = vsyncpa [#allocation4], 0
    %s14 = scalar_lea.sflag [#allocation4], 1
    %15 = vsyncpa %s14, 0
    loop: start=0, step=1, limit=4
    $region2: #{tpu_custom_call.1} parent=1 // loop_pre_header
      _
    $region3: #{tpu_custom_call.1} parent=1 // loop_header
      %s17 = sphi 0, %s21
      %p18 = scmp.ge.s32.totalorder %s17, 4
      %s25 = sphi 0, %s25
      %s27 = sphi 0, %s25
      %s28 = sphi 0, %s27
      %s42 = sphi 0, %s28
      %s48 = sphi 0, %s50
      %s51 = sphi 0, %s48
      %s52 = sphi 0, %s51
      %s68 = sphi 0, %s52
      %s74 = sphi 0, %s76
      %s77 = sphi 0, %s74
      %s78 = sphi 0, %s77
      %s94 = sphi 0, %s78
      %s100 = sphi 0, %s102
      %s103 = sphi 0, %s100
      %s104 = sphi 0, %s103
      %s120 = sphi 0, %s104
      %s126 = sphi 0, %s128
      %s129 = sphi 0, %s126
      %s130 = sphi 0, %s129
      %s146 = sphi 0, %s130
    $region4: #{tpu_custom_call.1} parent=1 // loop_header_branch
      %20 = sbr.rel (%p18) target = $region8
    $region5: #{tpu_custom_call.1} parent=1 // loop_body
      %s22 = ssub.s32 %s17, 1
      %s23 = ssub.s32 %s17, 2
      %s24 = sadd.s32 %s17, 1
      %s26 = sadd.s32 %s25, 1
      %p29 = scmp.eq.s32.totalorder %s17, 1
      %p30 = scmp.ne.s32.totalorder %s25, %s27
      %p31 = scmp.eq.s32.totalorder %s17, 0
      %p32 = por %p30, %p31
      %p33 = scmp.ne.s32.totalorder %s25, %s27
      %p34 = scmp.eq.s32.totalorder %s22, 1
      %p35 = por %p33, %p34
      %p36 = scmp.ne.s32.totalorder %s27, %s28
      %p37 = scmp.eq.s32.totalorder %s22, 0
      %p38 = por %p36, %p37
      %p39 = scmp.ne.s32.totalorder %s27, %s28
      %p40 = scmp.eq.s32.totalorder %s23, 1
      %p41 = por %p39, %p40
      %p43 = scmp.ne.s32.totalorder %s28, %s42
      %p44 = scmp.eq.s32.totalorder %s23, 0
      %p45 = por %p43, %p44
      %s46 = ssub.s32 %s17, %s24
      %p47 = scmp.eq.s32.totalorder %s46, 0
      %s49 = sadd.s32 %s48, 1
      %s50 = scalar_select %p47, %s48, %s49
      %p53 = pneg %p47
      %p54 = scmp.eq.s32.totalorder %s17, 1
      %p55 = por %p53, %p54
      %p56 = scmp.ne.s32.totalorder %s48, %s51
      %p57 = scmp.eq.s32.totalorder %s17, 0
      %p58 = por %p56, %p57
      %p59 = scmp.ne.s32.totalorder %s48, %s51
      %p60 = scmp.eq.s32.totalorder %s22, 1
      %p61 = por %p59, %p60
      %p62 = scmp.ne.s32.totalorder %s51, %s52
      %p63 = scmp.eq.s32.totalorder %s22, 0
      %p64 = por %p62, %p63
      %p65 = scmp.ne.s32.totalorder %s51, %s52
      %p66 = scmp.eq.s32.totalorder %s23, 1
      %p67 = por %p65, %p66
      %p69 = scmp.ne.s32.totalorder %s52, %s68
      %p70 = scmp.eq.s32.totalorder %s23, 0
      %p71 = por %p69, %p70
      %s72 = ssub.s32 %s17, %s24
      %p73 = scmp.eq.s32.totalorder %s72, 0
      %s75 = sadd.s32 %s74, 1
      %s76 = scalar_select %p73, %s74, %s75
      %p79 = pneg %p73
      %p80 = scmp.eq.s32.totalorder %s17, 1
      %p81 = por %p79, %p80
      %p82 = scmp.ne.s32.totalorder %s74, %s77
      %p83 = scmp.eq.s32.totalorder %s17, 0
      %p84 = por %p82, %p83
      %p85 = scmp.ne.s32.totalorder %s74, %s77
      %p86 = scmp.eq.s32.totalorder %s22, 1
      %p87 = por %p85, %p86
      %p88 = scmp.ne.s32.totalorder %s77, %s78
      %p89 = scmp.eq.s32.totalorder %s22, 0
      %p90 = por %p88, %p89
      %p91 = scmp.ne.s32.totalorder %s77, %s78
      %p92 = scmp.eq.s32.totalorder %s23, 1
      %p93 = por %p91, %p92
      %p95 = scmp.ne.s32.totalorder %s78, %s94
      %p96 = scmp.eq.s32.totalorder %s23, 0
      %p97 = por %p95, %p96
      %s98 = ssub.s32 %s17, %s24
      %p99 = scmp.eq.s32.totalorder %s98, 0
      %s101 = sadd.s32 %s100, 1
      %s102 = scalar_select %p99, %s100, %s101
      %p105 = pneg %p99
      %p106 = scmp.eq.s32.totalorder %s17, 1
      %p107 = por %p105, %p106
      %p108 = scmp.ne.s32.totalorder %s100, %s103
      %p109 = scmp.eq.s32.totalorder %s17, 0
      %p110 = por %p108, %p109
      %p111 = scmp.ne.s32.totalorder %s100, %s103
      %p112 = scmp.eq.s32.totalorder %s22, 1
      %p113 = por %p111, %p112
      %p114 = scmp.ne.s32.totalorder %s103, %s104
      %p115 = scmp.eq.s32.totalorder %s22, 0
      %p116 = por %p114, %p115
      %p117 = scmp.ne.s32.totalorder %s103, %s104
      %p118 = scmp.eq.s32.totalorder %s23, 1
      %p119 = por %p117, %p118
      %p121 = scmp.ne.s32.totalorder %s104, %s120
      %p122 = scmp.eq.s32.totalorder %s23, 0
      %p123 = por %p121, %p122
      %s124 = ssub.s32 %s17, %s24
      %p125 = scmp.eq.s32.totalorder %s124, 0
      %s127 = sadd.s32 %s126, 1
      %s128 = scalar_select %p125, %s126, %s127
      %p131 = pneg %p125
      %p132 = scmp.eq.s32.totalorder %s17, 1
      %p133 = por %p131, %p132
      %p134 = scmp.ne.s32.totalorder %s126, %s129
      %p135 = scmp.eq.s32.totalorder %s17, 0
      %p136 = por %p134, %p135
      %p137 = scmp.ne.s32.totalorder %s126, %s129
      %p138 = scmp.eq.s32.totalorder %s22, 1
      %p139 = por %p137, %p138
      %p140 = scmp.ne.s32.totalorder %s129, %s130
      %p141 = scmp.eq.s32.totalorder %s22, 0
      %p142 = por %p140, %p141
      %p143 = scmp.ne.s32.totalorder %s129, %s130
      %p144 = scmp.eq.s32.totalorder %s23, 1
      %p145 = por %p143, %p144
      %p147 = scmp.ne.s32.totalorder %s130, %s146
      %p148 = scmp.eq.s32.totalorder %s23, 0
      %p149 = por %p147, %p148
      %p150 = scmp.le.s32.totalorder 1, %s17
      %p151 = scmp.lt.s32.totalorder %s17, 3
      %p152 = pnand %p150, %p151
      %p153 = pneg %p152
      // Predicated region
      $region9: #{tpu_custom_call.1} parent=5 // pred_check
        _
      $region10: #{tpu_custom_call.1} parent=5 // pred_check_branch
        %155 = sbr.rel (%p152) target = $region12
      $region11: #{tpu_custom_call.1} parent=5 // pred_region
        %s156 = ssub.s32 %s17, 1
        // Predicated region
        $region13: #{tpu_custom_call.1} parent=11 // pred_check
          %p157 = pneg %p38
        $region14: #{tpu_custom_call.1} parent=11 // pred_check_branch
          %159 = sbr.rel (%p157) target = $region16
        $region15: #{tpu_custom_call.1} parent=11 // pred_region
          %s161 = ssub.s32 128, 128
          %162 = vsyncadd [#allocation3], %s161
          %s163 = sshll.u32 [#allocation2], 4
          %s164 = int_to_ptr.vmem [resolvable:$true] %s163
          %169 = dma.hbm_to_vmem [thread:$0]  %s0, 128, %s164, [#allocation3], 64, 64, 4
        $region16: #{tpu_custom_call.1} parent=11 // pred_fallthru
          _
      $region12: #{tpu_custom_call.1} parent=5 // pred_fallthru
        _
      %p170 = scmp.lt.s32.totalorder %s17, 2
      // Predicated region
      $region17: #{tpu_custom_call.1} parent=5 // pred_check
        %p171 = pneg %p170
      $region18: #{tpu_custom_call.1} parent=5 // pred_check_branch
        %173 = sbr.rel (%p171) target = $region20
      $region19: #{tpu_custom_call.1} parent=5 // pred_region
        // Predicated region
        $region21: #{tpu_custom_call.1} parent=19 // pred_check
          %p174 = pneg %p58
        $region22: #{tpu_custom_call.1} parent=19 // pred_check_branch
          %176 = sbr.rel (%p174) target = $region24
        $region23: #{tpu_custom_call.1} parent=19 // pred_region
          %s177 = sand.u32 %s48, 1
          %s178 = scalar_lea.sflag [#allocation6], %s177
          %s179 = sand.u32 %s48, 1
          %s180 = smul.addr %s179, 64
          %s181 = scalar_lea.vmem [#allocation5], %s180
          %s183 = ssub.s32 1024, 1024
          %184 = vsyncadd %s178, %s183
          %s185 = smul.addr %s17, 64
          %s186 = scalar_lea.hbm %s1, %s185
          %s187 = sshll.u32 %s181, 4
          %s188 = int_to_ptr.vmem [resolvable:$true] %s187
          %193 = dma.hbm_to_vmem [thread:$0]  %s186, 1024, %s188, %s178, 128, 64, 4
        $region24: #{tpu_custom_call.1} parent=19 // pred_fallthru
          _
        // Predicated region
        $region25: #{tpu_custom_call.1} parent=19 // pred_check
          %p194 = pneg %p84
        $region26: #{tpu_custom_call.1} parent=19 // pred_check_branch
          %196 = sbr.rel (%p194) target = $region28
        $region27: #{tpu_custom_call.1} parent=19 // pred_region
          %p197 = scmp.lt.s32.totalorder %s17, 1
          %s198 = scalar_select %p197, %s17, 1
          %s199 = scalar_lea.vmem %s2, %s198
        $region28: #{tpu_custom_call.1} parent=19 // pred_fallthru
          _
        // Predicated region
        $region29: #{tpu_custom_call.1} parent=19 // pred_check
          %p200 = pneg %p110
        $region30: #{tpu_custom_call.1} parent=19 // pred_check_branch
          %202 = sbr.rel (%p200) target = $region32
        $region31: #{tpu_custom_call.1} parent=19 // pred_region
          %p203 = scmp.lt.s32.totalorder %s17, 1
          %s204 = scalar_select %p203, %s17, 1
          %s205 = scalar_lea.vmem %s3, %s204
        $region32: #{tpu_custom_call.1} parent=19 // pred_fallthru
          _
      $region20: #{tpu_custom_call.1} parent=5 // pred_fallthru
        _
      %p206 = scmp.le.s32.totalorder 1, %s17
      %p207 = scmp.lt.s32.totalorder %s17, 3
      %p208 = pnand %p206, %p207
      %p209 = pneg %p208
      // Predicated region
      $region33: #{tpu_custom_call.1} parent=5 // pred_check
        _
      $region34: #{tpu_custom_call.1} parent=5 // pred_check_branch
        %211 = sbr.rel (%p208) target = $region36
      $region35: #{tpu_custom_call.1} parent=5 // pred_region
        %s212 = ssub.s32 %s17, 1
        // Predicated region
        $region37: #{tpu_custom_call.1} parent=35 // pred_check
          %p213 = pneg %p38
        $region38: #{tpu_custom_call.1} parent=35 // pred_check_branch
          %215 = sbr.rel (%p213) target = $region40
        $region39: #{tpu_custom_call.1} parent=35 // pred_region
          %216 = dma.done [#allocation3], 128
        $region40: #{tpu_custom_call.1} parent=35 // pred_fallthru
          _
        %s217 = sand.u32 %s51, 1
        %s218 = scalar_lea.sflag [#allocation6], %s217
        %s219 = sand.u32 %s51, 1
        %s220 = smul.addr %s219, 64
        %s221 = scalar_lea.vmem [#allocation5], %s220
        // Predicated region
        $region41: #{tpu_custom_call.1} parent=35 // pred_check
          %p222 = pneg %p64
        $region42: #{tpu_custom_call.1} parent=35 // pred_check_branch
          %224 = sbr.rel (%p222) target = $region44
        $region43: #{tpu_custom_call.1} parent=35 // pred_region
          %225 = dma.done %s218, 1024
        $region44: #{tpu_custom_call.1} parent=35 // pred_fallthru
          _
        %p226 = pneg %p38
        %p227 = pneg %p35
        %s228 = sand.u32 %s51, 1
        %s229 = scalar_lea.sflag [#allocation6], %s228
        %s230 = sand.u32 %s51, 1
        %s231 = smul.addr %s230, 64
        %s232 = scalar_lea.vmem [#allocation5], %s231
        %p233 = pneg %p64
        %p234 = pneg %p61
        %p235 = scmp.lt.s32.totalorder %s22, 1
        %s236 = scalar_select %p235, %s22, 1
        %s237 = scalar_lea.vmem %s2, %s236
        %p238 = pneg %p90
        %p239 = pneg %p87
        %p240 = scmp.lt.s32.totalorder %s22, 1
        %s241 = scalar_select %p240, %s22, 1
        %s242 = scalar_lea.vmem %s3, %s241
        %p243 = pneg %p116
        %p244 = pneg %p113
        %p245 = pneg %p142
        %p246 = pneg %p139
        %s247 = sand.u32 %s129, 1
        %s248 = scalar_lea.sflag [#allocation4], %s247
        %s249 = sand.u32 %s129, 1
        %s250 = smul.addr %s249, 8
        %s251 = scalar_lea.vmem [#allocation7], %s250
        %p252 = scmp.lt.s32.totalorder %s22, 1
        %s253 = scalar_select %p252, %s22, 1
        %s254 = scalar_lea.vmem %s2, %s253
        %p255 = scmp.lt.s32.totalorder %s22, 1
        %s256 = scalar_select %p255, %s22, 1
        %s257 = scalar_lea.vmem %s3, %s256
        %v259 = vld [vmem:[#allocation2] sm:$0xf]
        %v260 = vld [vmem:[#allocation2 + $0x4] sm:$0xf]
        %v261 = vld [vmem:[%s221] sm:$0xf]
        %v262 = vld [vmem:[%s221 + $0x4] sm:$0xf]
        %v263 = vld [vmem:[%s221 + $0x8] sm:$0xf]
        %v264 = vld [vmem:[%s221 + $0xc] sm:$0xf]
        %v265 = vld [vmem:[%s221 + $0x10] sm:$0xf]
        %v266 = vld [vmem:[%s221 + $0x14] sm:$0xf]
        %v267 = vld [vmem:[%s221 + $0x18] sm:$0xf]
        %v268 = vld [vmem:[%s221 + $0x1c] sm:$0xf]
        %v269 = vld [vmem:[%s221 + $0x20] sm:$0xf]
        %v270 = vld [vmem:[%s221 + $0x24] sm:$0xf]
        %v271 = vld [vmem:[%s221 + $0x28] sm:$0xf]
        %v272 = vld [vmem:[%s221 + $0x2c] sm:$0xf]
        %v273 = vld [vmem:[%s221 + $0x30] sm:$0xf]
        %v274 = vld [vmem:[%s221 + $0x34] sm:$0xf]
        %v275 = vld [vmem:[%s221 + $0x38] sm:$0xf]
        %v276 = vld [vmem:[%s221 + $0x3c] sm:$0xf]
        %v279 = vunpack.c.l.b16 %v259
        %v280 = vunpack.c.l.b16 %v260
        %v281 = vpack.c.b16 %v280, %v279
        %v299 = vunpack.c.l.b16 %v261
        %v300 = vunpack.c.l.b16 %v262
        %v301 = vunpack.c.l.b16 %v263
        %v302 = vunpack.c.l.b16 %v264
        %v303 = vunpack.c.l.b16 %v265
        %v304 = vunpack.c.l.b16 %v266
        %v305 = vunpack.c.l.b16 %v267
        %v306 = vunpack.c.l.b16 %v268
        %v307 = vunpack.c.l.b16 %v269
        %v308 = vunpack.c.l.b16 %v270
        %v309 = vunpack.c.l.b16 %v271
        %v310 = vunpack.c.l.b16 %v272
        %v311 = vunpack.c.l.b16 %v273
        %v312 = vunpack.c.l.b16 %v274
        %v313 = vunpack.c.l.b16 %v275
        %v314 = vunpack.c.l.b16 %v276
        %v315 = vpack.c.b16 %v300, %v299
        %v316 = vpack.c.b16 %v302, %v301
        %v317 = vpack.c.b16 %v304, %v303
        %v318 = vpack.c.b16 %v306, %v305
        %v319 = vpack.c.b16 %v308, %v307
        %v320 = vpack.c.b16 %v310, %v309
        %v321 = vpack.c.b16 %v312, %v311
        %v322 = vpack.c.b16 %v314, %v313
        %331 = vmatprep.subr.bf16.mxu0 0
        %332 = vmatpush1.bf16.msra.mxu0 %v315
        %333 = vmatprep.subr.bf16.mxu0 0
        %334 = vmatpush1.bf16.msra.mxu0 %v316
        %335 = vmatprep.subr.bf16.mxu0 0
        %336 = vmatpush1.bf16.msra.mxu0 %v317
        %337 = vmatprep.subr.bf16.mxu0 0
        %338 = vmatpush1.bf16.msra.mxu0 %v318
        %339 = vmatprep.subr.bf16.mxu0 0
        %340 = vmatpush1.bf16.msra.mxu0 %v319
        %341 = vmatprep.subr.bf16.mxu0 0
        %342 = vmatpush1.bf16.msra.mxu0 %v320
        %343 = vmatprep.subr.bf16.mxu0 0
        %344 = vmatpush1.bf16.msra.mxu0 %v321
        %345 = vmatprep.subr.bf16.mxu0 0
        %346 = vmatpush1.bf16.msra.mxu0 %v322
        %347 = vmatprep.subr.bf16.mxu0 0
        %348 = vmatpush1.bf16.msra.mxu0 0
        %349 = vmatprep.subr.bf16.mxu0 0
        %350 = vmatpush1.bf16.msra.mxu0 0
        %351 = vmatprep.subr.bf16.mxu0 0
        %352 = vmatpush1.bf16.msra.mxu0 0
        %353 = vmatprep.subr.bf16.mxu0 0
        %354 = vmatpush1.bf16.msra.mxu0 0
        %355 = vmatprep.subr.bf16.mxu0 0
        %356 = vmatpush1.bf16.msra.mxu0 0
        %357 = vmatprep.subr.bf16.mxu0 0
        %358 = vmatpush1.bf16.msra.mxu0 0
        %359 = vmatprep.subr.bf16.mxu0 0
        %360 = vmatpush1.bf16.msra.mxu0 0
        %361 = vmatprep.subr.bf16.mxu0 0
        %362 = vmatpush1.bf16.msra.mxu0 0
        %363 = vmatprep.mubr.bf16.mxu0 0
        %364 = vmatmul.mubr.bf16.gmra.mrb[0].mxu0 %v281
        %v365 = vpop.f32.mrb[0].mxu0
        %v366 = vadd.f32 0.0, %v365
        %v367 = vpop.f32.mrb[0].mxu0
        %v368 = vpop.f32.mrb[0].mxu0
        %v369 = vadd.f32 0.0, %v368
        %v370 = vpop.f32.mrb[0].mxu0
        %371 = vdwg.mxu0
        %v372 = vadd.f32 %v366, %v369
        %v373 = vrot.slane %v372, 4
        %v374 = vadd.f32 %v372, %v373
        %v375 = vrot.slane %v374, 2
        %v376 = vadd.f32 %v374, %v375
        %v377 = vrot.slane %v376, 1
        %v378 = vadd.f32 %v376, %v377
        %v379 = vmul.f32 %v378, 0.0625
        %v380 = vsub.f32 %v366, %v379
        %v381 = vsub.f32 %v369, %v379
        %v382 = vmul.f32 %v380, %v380
        %v383 = vmul.f32 %v381, %v381
        %v384 = vadd.f32 %v382, %v383
        %v385 = vrot.slane %v384, 4
        %v386 = vadd.f32 %v384, %v385
        %v387 = vrot.slane %v386, 2
        %v388 = vadd.f32 %v386, %v387
        %v389 = vrot.slane %v388, 1
        %v390 = vadd.f32 %v388, %v389
        %v391 = vmul.f32 %v390, 0.0625
        %v392 = vadd.f32 %v391, 1e-05
        %v393 = vrsqrt.pop %v392
        %v394 = vmul.f32 %v380, %v393
        %v395 = vmul.f32 %v381, %v393
        %v396 = vld [vmem:[%s254] sm:$0x1]
        %v398 = vlaneseq
        %v399 = vshrl.u32 %v398, 7
        %v400 = vsub.s32 0, %v399
        %v401 = vrot.slane %v396, %v400
        %v403 = vmul.f32 %v394, %v401
        %v404 = vmul.f32 %v395, %v401
        %v405 = vld [vmem:[%s257] sm:$0x1]
        %v407 = vlaneseq
        %v408 = vshrl.u32 %v407, 7
        %v409 = vsub.s32 0, %v408
        %v410 = vrot.slane %v405, %v409
        %v412 = vadd.f32 %v403, %v410
        %v413 = vadd.f32 %v404, %v410
        %v414 = vmax.f32 %v412, 0.0
        %v415 = vmax.f32 %v413, 0.0
        %v416 = vpack.c.bf16 %v415, %v414
        %v418 = vunpack.c.l.b16 %v416
        %v419 = vunpack.c.h.b16 %v416
        %v420 = vpack.c.b16 %v418, %v418
        %v421 = vpack.c.b16 %v419, %v419
        %424 = vst [vmem:[%s251] sm:$0xf] %v420
        %425 = vst [vmem:[%s251 + $0x4] sm:$0xf] %v421
        %s426 = sand.u32 %s129, 1
        %s427 = scalar_lea.sflag [#allocation4], %s426
        %s428 = sand.u32 %s129, 1
        %s429 = smul.addr %s428, 8
        %s430 = scalar_lea.vmem [#allocation7], %s429
        // Predicated region
        $region45: #{tpu_custom_call.1} parent=35 // pred_check
          %p431 = pneg %p139
        $region46: #{tpu_custom_call.1} parent=35 // pred_check_branch
          %433 = sbr.rel (%p431) target = $region48
        $region47: #{tpu_custom_call.1} parent=35 // pred_region
          %s435 = ssub.s32 128, 128
          %436 = vsyncadd %s427, %s435
          %s437 = smul.addr %s22, 64
          %s438 = scalar_lea.hbm %s4, %s437
          %s439 = sshll.u32 %s430, 4
          %s440 = int_to_ptr.vmem [resolvable:$true] %s439
          %445 = dma.vmem_to_hbm [thread:$0]  %s440, 128, %s438, %s427, 64, 128, 4
        $region48: #{tpu_custom_call.1} parent=35 // pred_fallthru
          _
      $region36: #{tpu_custom_call.1} parent=5 // pred_fallthru
        _
      %p446 = scmp.le.s32.totalorder 2, %s17
      // Predicated region
      $region49: #{tpu_custom_call.1} parent=5 // pred_check
        %p447 = pneg %p446
      $region50: #{tpu_custom_call.1} parent=5 // pred_check_branch
        %449 = sbr.rel (%p447) target = $region52
      $region51: #{tpu_custom_call.1} parent=5 // pred_region
        %s450 = ssub.s32 %s17, 2
        // Predicated region
        $region53: #{tpu_custom_call.1} parent=51 // pred_check
          %p451 = pneg %p145
        $region54: #{tpu_custom_call.1} parent=51 // pred_check_branch
          %453 = sbr.rel (%p451) target = $region56
        $region55: #{tpu_custom_call.1} parent=51 // pred_region
          %s454 = sand.u32 %s130, 1
          %s455 = scalar_lea.sflag [#allocation4], %s454
          %s456 = sand.u32 %s130, 1
          %s457 = smul.addr %s456, 8
          %s458 = scalar_lea.vmem [#allocation7], %s457
          %459 = dma.done %s455, 128
        $region56: #{tpu_custom_call.1} parent=51 // pred_fallthru
          _
      $region52: #{tpu_custom_call.1} parent=5 // pred_fallthru
        _
    $region6: #{tpu_custom_call.1} parent=1 // loop_footer
      %s21 = sadd.s32 1, %s17
    $region7: #{tpu_custom_call.1} parent=1 // loop_footer_branch
      %16 = sbr.rel target = $region3
    $region8: #{tpu_custom_call.1} parent=1 // loop_exit
      _
    %460 = vsyncpa [#allocation3], 1
    %s461 = scalar_lea.sflag [#allocation3], 1
    %462 = vsyncpa %s461, 1
    %463 = vsyncpa [#allocation6], 1
    %s464 = scalar_lea.sflag [#allocation6], 1
    %465 = vsyncpa %s464, 1
    %466 = vsyncpa [#allocation4], 1
    %s467 = scalar_lea.sflag [#allocation4], 1
    %468 = vsyncpa %s467, 1

</llo_original>
